<compile_context>
chip_gen: v7x
topology: tpu7x:2x2x1
jax: 0.10.0
libtpu: 0.0.40
codegen_flags: <defaults>
</compile_context>

<pallas_src>
import jax
import jax.numpy as jnp
from jax.experimental import pallas as pl
from jax.experimental.pallas import tpu as pltpu


def _round_up(x, m):
    return ((x + m - 1) // m) * m


def _block_diag(w, g):
    """(r, c) -> (g*r, g*c) block-diagonal matrix with `w` on the diagonal."""
    if g == 1:
        return w
    r, c = w.shape
    eye = jnp.eye(g, dtype=w.dtype)
    return (eye[:, None, :, None] * w[None, :, None, :]).reshape(g * r, g * c)


def _sage_kernel(xg_ref, nxg_ref, wl_ref, wr_ref, o_ref):
    # xg_ref : (tg, G*F_in)        nxg_ref: (tg, G*K*F_in)
    # wl_ref : (G*F_in, G*F_out)   wr_ref : (G*K*F_in, G*F_out)
    # o_ref  : (tg, G*F_out)
    # Mean/sum aggregation is already folded into wr (scaled + replicated), so
    # the whole tile is two lane-dense MXU matmuls into one f32 accumulator.
    acc = jnp.dot(xg_ref[...], wl_ref[...], preferred_element_type=jnp.float32)
    acc = acc + jnp.dot(nxg_ref[...], wr_ref[...],
                        preferred_element_type=jnp.float32)
    o_ref[...] = acc.astype(o_ref.dtype)


def sage_aggregator(x, neigh_x, w_l_t, w_r_t, *, aggr="mean", tm=1024):
    """SAGE 'mean'/'sum' aggregation + two linears (bias=False, concat=False).

    x:        [N, F_in]
    neigh_x:  [N, K, F_in]
    w_l_t:    [F_in, F_out]   (transpose of nn.Linear weight)
    w_r_t:    [F_in, F_out]
    returns   [N, F_out]
    """
    assert aggr in ("mean", "sum")
    N, F_in = x.shape
    _, K, _ = neigh_x.shape
    F_out = w_l_t.shape[1]
    out_dtype = x.dtype
    itemsize = jnp.dtype(out_dtype).itemsize

    # Lane-dense row grouping: G original rows share one 128-wide output row.
    G = 128 // F_out if (F_out < 128 and 128 % F_out == 0) else 1

    # Fold the neighbor aggregation into the right weight (scaled + replicated
    # along the flattened K axis).  'mean' -> /K, 'sum' -> as-is.
    scale = (1.0 / K) if aggr == "mean" else 1.0
    w_r_rep = jnp.tile(w_r_t * jnp.asarray(scale, w_r_t.dtype), (K, 1))

    # Block-diagonal weights so grouped rows multiply independently.
    w_l_bd = _block_diag(w_l_t, G)      # (G*F_in,   G*F_out)
    w_r_bd = _block_diag(w_r_rep, G)    # (G*K*F_in, G*F_out)
    weight_bytes = ((w_l_bd.size + w_r_bd.size)
                    * jnp.dtype(w_l_bd.dtype).itemsize)

    # Row tile (in original-row units).  Needs tm % (8*G) == 0 so the grouped
    # sublane dim is a multiple of 8.  Cap it so double-buffered tiles stay
    # comfortably inside VMEM; pad N instead of asserting.
    row_align = 8 * G
    row_bytes = (F_in + K * F_in + F_out) * itemsize       # per original row
    tile_budget = 8 << 20                                   # live-tile budget
    tm_cap = max(row_align,
                 (tile_budget // (2 * row_bytes)) // row_align * row_align)
    tm_eff = min(_round_up(tm, row_align), tm_cap, _round_up(N, row_align))
    n_pad = _round_up(N, tm_eff)
    if n_pad != N:
        x = jnp.pad(x, ((0, n_pad - N), (0, 0)))
        neigh_x = jnp.pad(neigh_x, ((0, n_pad - N), (0, 0), (0, 0)))

    # Free, contiguous reshapes into the grouped, lane-dense layout.
    x_g = x.reshape(n_pad // G, G * F_in)
    nx_g = neigh_x.reshape(n_pad // G, G * K * F_in)

    tg = tm_eff // G
    grid = (n_pad // tm_eff,)

    # VMEM budget: double-buffered I/O tiles + (conservatively doubled) weights.
    tile_bytes = tg * (G * F_in + G * K * F_in + G * F_out) * itemsize
    vmem_limit = 2 * tile_bytes + 2 * weight_bytes + (4 << 20)
    vmem_limit = int(min(max(vmem_limit, 16 << 20), 48 << 20))  # safe on v7x

    cost = pl.CostEstimate(
        flops=2 * n_pad * (K + 1) * F_in * F_out,
        transcendentals=0,
        bytes_accessed=(n_pad * (F_in + K * F_in + F_out)) * itemsize
        + weight_bytes,
    )

    out_g = pl.pallas_call(
        _sage_kernel,
        out_shape=jax.ShapeDtypeStruct((n_pad // G, G * F_out), out_dtype),
        grid_spec=pltpu.PrefetchScalarGridSpec(
            num_scalar_prefetch=0,
            grid=grid,
            in_specs=[
                pl.BlockSpec((tg, G * F_in), lambda i: (i, 0)),
                pl.BlockSpec((tg, G * K * F_in), lambda i: (i, 0)),
                # Constant index maps: weight blocks are fetched once and
                # reused across the whole grid.
                pl.BlockSpec((G * F_in, G * F_out), lambda i: (0, 0)),
                pl.BlockSpec((G * K * F_in, G * F_out), lambda i: (0, 0)),
            ],
            out_specs=pl.BlockSpec((tg, G * F_out), lambda i: (i, 0)),
        ),
        compiler_params=pltpu.CompilerParams(
            dimension_semantics=("parallel",),   # shards rows across TCs
            vmem_limit_bytes=vmem_limit,
        ),
        cost_estimate=cost,
    )(x_g, nx_g, w_l_bd, w_r_bd)

    out = out_g.reshape(n_pad, F_out)
    return out[:N] if n_pad != N else out


if __name__ == "__main__":
    key = jax.random.PRNGKey(0)

    def run_case(N, K, F_in, F_out, aggr="mean"):
        k_x, k_n, k_wl, k_wr = jax.random.split(jax.random.fold_in(key, N), 4)
        x = jax.random.normal(k_x, (N, F_in), dtype=jnp.float32)
        neigh_x = jax.random.normal(k_n, (N, K, F_in), dtype=jnp.float32)
        # nn.Linear weights are (out, in); we store the transpose (in, out).
        bound = 1.0 / (F_in ** 0.5)
        w_l_t = jax.random.uniform(k_wl, (F_in, F_out), jnp.float32, -bound, bound)
        w_r_t = jax.random.uniform(k_wr, (F_in, F_out), jnp.float32, -bound, bound)

        out = jax.block_until_ready(
            sage_aggregator(x, neigh_x, w_l_t, w_r_t, aggr=aggr))

        # Pure-JAX reference of the forward semantics.
        agg = jnp.mean if aggr == "mean" else jnp.sum
        ref = x @ w_l_t + agg(neigh_x, axis=1) @ w_r_t
        assert out.shape == (N, F_out)
        assert jnp.allclose(out, ref, atol=1e-4, rtol=1e-4), float(
            jnp.max(jnp.abs(out - ref)))

    run_case(128, 8, 32, 32)            # exact multiple of the grouped tile
    run_case(100, 8, 32, 32)            # exercises the N-padding / trim path
    run_case(96, 5, 16, 64, aggr="sum") # sum aggregation, different G
    # TODO(synk): concat=True / bias=True variants and list-of-tensor inputs
    # from the original forward are handled by the caller, not this kernel.
    print("KERNEL_OK")
</pallas_src>

<mosaic_0001>
module attributes {stable_mosaic.version = 11 : i64} {
  func.func @_sage_kernel(%arg0: i32, %arg1: memref<32x128xf32, #tpu.memory_space<vmem>>, %arg2: memref<32x1024xf32, #tpu.memory_space<vmem>>, %arg3: memref<128x128xf32, #tpu.memory_space<vmem>>, %arg4: memref<1024x128xf32, #tpu.memory_space<vmem>>, %arg5: memref<32x128xf32, #tpu.memory_space<vmem>>) attributes {dimension_semantics = [#tpu.dimension_semantics<parallel>], iteration_bounds = array<i64: 1>, scalar_prefetch = 0 : i64, scratch_operands = 0 : i64, tpu.core_type = #tpu.core_type<tc>, window_params = [{transform_indices = @transform_0, window_bounds = array<i64: 32, 128>}, {transform_indices = @transform_1, window_bounds = array<i64: 32, 1024>}, {pipeline_mode = #tpu.pipeline_mode<synchronous>, transform_indices = @transform_2, window_bounds = array<i64: 128, 128>}, {pipeline_mode = #tpu.pipeline_mode<synchronous>, transform_indices = @transform_3, window_bounds = array<i64: 1024, 128>}, {transform_indices = @transform_4, window_bounds = array<i64: 32, 128>}]} {
    %c0 = arith.constant 0 : index
    %c0_0 = arith.constant 0 : index
    %0 = vector.load %arg1[%c0, %c0_0] : memref<32x128xf32, #tpu.memory_space<vmem>>, vector<32x128xf32>
    %c0_1 = arith.constant 0 : index
    %c0_2 = arith.constant 0 : index
    %1 = vector.load %arg3[%c0_1, %c0_2] : memref<128x128xf32, #tpu.memory_space<vmem>>, vector<128x128xf32>
    %cst = arith.constant dense<0.000000e+00> : vector<32x128xf32>
    %2 = tpu.matmul %0, %1, %cst {dimension_numbers = #tpu.dot_dimension_numbers<[1], [0], [0], [1], [0, 0, 1, 1], [], []>} : vector<32x128xf32>, vector<128x128xf32>, vector<32x128xf32> -> vector<32x128xf32>
    %c0_3 = arith.constant 0 : index
    %c0_4 = arith.constant 0 : index
    %3 = vector.load %arg2[%c0_3, %c0_4] : memref<32x1024xf32, #tpu.memory_space<vmem>>, vector<32x1024xf32>
    %c0_5 = arith.constant 0 : index
    %c0_6 = arith.constant 0 : index
    %4 = vector.load %arg4[%c0_5, %c0_6] : memref<1024x128xf32, #tpu.memory_space<vmem>>, vector<1024x128xf32>
    %cst_7 = arith.constant dense<0.000000e+00> : vector<32x128xf32>
    %5 = tpu.matmul %3, %4, %cst_7 {dimension_numbers = #tpu.dot_dimension_numbers<[1], [0], [0], [1], [0, 0, 1, 1], [], []>} : vector<32x1024xf32>, vector<1024x128xf32>, vector<32x128xf32> -> vector<32x128xf32>
    %6 = arith.addf %2, %5 : vector<32x128xf32>
    %c0_8 = arith.constant 0 : index
    %c0_9 = arith.constant 0 : index
    %7 = vector.load %arg5[%c0_8, %c0_9] : memref<32x128xf32, #tpu.memory_space<vmem>>, vector<32x128xf32>
    tpu.vector_store %arg5[%c0_8, %c0_9], %6 {strides = array<i32>} : memref<32x128xf32, #tpu.memory_space<vmem>>, vector<32x128xf32>,
    return
  }
  func.func @transform_0(%arg0: i32) -> (i32, i32) {
    %c0_i32 = arith.constant 0 : i32
    %c0_i32_0 = arith.constant 0 : i32
    return %arg0, %c0_i32 : i32, i32
  }
  func.func @transform_1(%arg0: i32) -> (i32, i32) {
    %c0_i32 = arith.constant 0 : i32
    %c0_i32_0 = arith.constant 0 : i32
    return %arg0, %c0_i32 : i32, i32
  }
  func.func @transform_2(%arg0: i32) -> (i32, i32) {
    %c0_i32 = arith.constant 0 : i32
    %c0_i32_0 = arith.constant 0 : i32
    %c0_i32_1 = arith.constant 0 : i32
    return %c0_i32, %c0_i32_0 : i32, i32
  }
  func.func @transform_3(%arg0: i32) -> (i32, i32) {
    %c0_i32 = arith.constant 0 : i32
    %c0_i32_0 = arith.constant 0 : i32
    %c0_i32_1 = arith.constant 0 : i32
    return %c0_i32, %c0_i32_0 : i32, i32
  }
  func.func @transform_4(%arg0: i32) -> (i32, i32) {
    %c0_i32 = arith.constant 0 : i32
    %c0_i32_0 = arith.constant 0 : i32
    return %arg0, %c0_i32 : i32, i32
  }
}

</mosaic_0001>

<llo_original>
// kernel: tpu_custom_call.1
$region0: #{tpu_custom_call.1}
  #allocation0 [shape = 'u32[]', space=smem, size = 0x4, offset = 0x4, fixed_abs, tag = 'smem constant byte address 0x4 - core index']
  #allocation1 [shape = 'u32[144,128]{1,0:T(1,128)}', space=vmem, size = 0x12000, scoped, tag = 'internal scratch']
  %s0 = inlined_call_operand.hbm [shape: f32[32,128], index: 0, kind: input, shape index: {}]
  %s1 = inlined_call_operand.hbm [shape: f32[32,1024], index: 1, kind: input, shape index: {}]
  %s2 = inlined_call_operand.hbm [shape: f32[128,128], index: 2, kind: input, shape index: {}]
  %s3 = inlined_call_operand.hbm [shape: f32[1024,128], index: 3, kind: input, shape index: {}]
  %s4 = inlined_call_operand.hbm [shape: f32[32,128], index: 4, kind: output, shape index: {}]
  %s5 = sld [smem:[#allocation0]]
  $region42: #{tpu_custom_call.1} parent=0
    _
  %s7 = ssub.s32 1, %s5
  %s8 = scalar_select 0, %s7, %s5
  $region1: #{tpu_custom_call.1} parent=0
    #allocation2 [shape = 'u8[16384]{0}', space=vmem, size = 0x4000, scoped, tag = 'input window, operand 0, single buffered']
    #allocation3 [shape = 's32[1]{0}', space=sflag, size = 0x4, scoped, tag = 'scoped memory for tpu_custom_call.1']
    #allocation4 [shape = 's32[1]{0}', space=sflag, size = 0x4, scoped, tag = 'scoped memory for tpu_custom_call.1']
    #allocation5 [shape = 'u8[131072]{0}', space=vmem, size = 0x20000, scoped, tag = 'input window, operand 1, single buffered']
    #allocation6 [shape = 's32[1]{0}', space=sflag, size = 0x4, scoped, tag = 'scoped memory for tpu_custom_call.1']
    #allocation7 [shape = 'u8[65536]{0}', space=vmem, size = 0x10000, scoped, tag = 'input window, operand 2, single buffered']
    #allocation8 [shape = 'u8[524288]{0}', space=vmem, size = 0x80000, scoped, tag = 'input window, operand 3, single buffered']
    #allocation9 [shape = 's32[1]{0}', space=sflag, size = 0x4, scoped, tag = 'scoped memory for tpu_custom_call.1']
    #allocation10 [shape = 'u8[16384]{0}', space=vmem, size = 0x4000, scoped, tag = 'output window, operand 0, single buffered']
    %9 = vsyncpa [#allocation3], 0
    %10 = vsyncpa [#allocation6], 0
    %11 = vsyncpa [#allocation9], 0
    %12 = vsyncpa [#allocation4], 0
    // Predicated region
    $region2: #{tpu_custom_call.1} parent=1 // pred_check
      _
    $region3: #{tpu_custom_call.1} parent=1 // pred_check_branch
      %14 = sbr.rel (0) target = $region5
    $region4: #{tpu_custom_call.1} parent=1 // pred_region
      %s16 = ssub.s32 512, 512
      %17 = vsyncadd [#allocation3], %s16
      %s18 = sshll.u32 [#allocation2], 4
      %s19 = int_to_ptr.vmem [resolvable:$true] %s18
      %24 = dma.hbm_to_vmem [thread:$0]  %s0, 512, %s19, [#allocation3], 128, 128, 8
    $region5: #{tpu_custom_call.1} parent=1 // pred_fallthru
      _
    // Predicated region
    $region6: #{tpu_custom_call.1} parent=1 // pred_check
      _
    $region7: #{tpu_custom_call.1} parent=1 // pred_check_branch
      %26 = sbr.rel (0) target = $region9
    $region8: #{tpu_custom_call.1} parent=1 // pred_region
      %s28 = ssub.s32 4096, 4096
      %29 = vsyncadd [#allocation6], %s28
      %s30 = sshll.u32 [#allocation5], 4
      %s31 = int_to_ptr.vmem [resolvable:$true] %s30
      %36 = dma.hbm_to_vmem [thread:$0]  %s1, 4096, %s31, [#allocation6], 1024, 1024, 64
    $region9: #{tpu_custom_call.1} parent=1 // pred_fallthru
      _
    // Predicated region
    $region10: #{tpu_custom_call.1} parent=1 // pred_check
      _
    $region11: #{tpu_custom_call.1} parent=1 // pred_check_branch
      %38 = sbr.rel (0) target = $region13
    $region12: #{tpu_custom_call.1} parent=1 // pred_region
      %s40 = ssub.s32 2048, 2048
      %41 = vsyncadd [#allocation6], %s40
      %s42 = sshll.u32 [#allocation7], 4
      %s43 = int_to_ptr.vmem [resolvable:$true] %s42
      %48 = dma.hbm_to_vmem [thread:$0]  %s2, 2048, %s43, [#allocation6], 128, 128, 8
    $region13: #{tpu_custom_call.1} parent=1 // pred_fallthru
      _
    // Predicated region
    $region14: #{tpu_custom_call.1} parent=1 // pred_check
      _
    $region15: #{tpu_custom_call.1} parent=1 // pred_check_branch
      %50 = sbr.rel (0) target = $region17
    $region16: #{tpu_custom_call.1} parent=1 // pred_region
      %s52 = ssub.s32 16384, 16384
      %53 = vsyncadd [#allocation9], %s52
      %s54 = sshll.u32 [#allocation8], 4
      %s55 = int_to_ptr.vmem [resolvable:$true] %s54
      %60 = dma.hbm_to_vmem [thread:$0]  %s3, 16384, %s55, [#allocation9], 128, 128, 8
    $region17: #{tpu_custom_call.1} parent=1 // pred_fallthru
      _
    // Predicated region
    $region18: #{tpu_custom_call.1} parent=1 // pred_check
      _
    $region19: #{tpu_custom_call.1} parent=1 // pred_check_branch
      %62 = sbr.rel (0) target = $region21
    $region20: #{tpu_custom_call.1} parent=1 // pred_region
      %63 = dma.done [#allocation3], 512
    $region21: #{tpu_custom_call.1} parent=1 // pred_fallthru
      _
    // Predicated region
    $region22: #{tpu_custom_call.1} parent=1 // pred_check
      _
    $region23: #{tpu_custom_call.1} parent=1 // pred_check_branch
      %65 = sbr.rel (0) target = $region25
    $region24: #{tpu_custom_call.1} parent=1 // pred_region
      %66 = dma.done [#allocation6], 4096
    $region25: #{tpu_custom_call.1} parent=1 // pred_fallthru
      _
    // Predicated region
    $region26: #{tpu_custom_call.1} parent=1 // pred_check
      _
    $region27: #{tpu_custom_call.1} parent=1 // pred_check_branch
      %68 = sbr.rel (0) target = $region29
    $region28: #{tpu_custom_call.1} parent=1 // pred_region
      %69 = dma.done [#allocation6], 2048
    $region29: #{tpu_custom_call.1} parent=1 // pred_fallthru
      _
    // Predicated region
    $region30: #{tpu_custom_call.1} parent=1 // pred_check
      _
    $region31: #{tpu_custom_call.1} parent=1 // pred_check_branch
      %71 = sbr.rel (0) target = $region33
    $region32: #{tpu_custom_call.1} parent=1 // pred_region
      %72 = dma.done [#allocation9], 16384
    $region33: #{tpu_custom_call.1} parent=1 // pred_fallthru
      _
    %v73 = vld [vmem:[#allocation2] sm:$0xff]
    %v74 = vld [vmem:[#allocation2 + $0x8] sm:$0xff]
    %v75 = vld [vmem:[#allocation2 + $0x10] sm:$0xff]
    %v76 = vld [vmem:[#allocation2 + $0x18] sm:$0xff]
    %v77 = vld [vmem:[#allocation7] sm:$0xff]
    %v78 = vld [vmem:[#allocation7 + $0x8] sm:$0xff]
    %v79 = vld [vmem:[#allocation7 + $0x10] sm:$0xff]
    %v80 = vld [vmem:[#allocation7 + $0x18] sm:$0xff]
    %v81 = vld [vmem:[#allocation7 + $0x20] sm:$0xff]
    %v82 = vld [vmem:[#allocation7 + $0x28] sm:$0xff]
    %v83 = vld [vmem:[#allocation7 + $0x30] sm:$0xff]
    %v84 = vld [vmem:[#allocation7 + $0x38] sm:$0xff]
    %v85 = vld [vmem:[#allocation7 + $0x40] sm:$0xff]
    %v86 = vld [vmem:[#allocation7 + $0x48] sm:$0xff]
    %v87 = vld [vmem:[#allocation7 + $0x50] sm:$0xff]
    %v88 = vld [vmem:[#allocation7 + $0x58] sm:$0xff]
    %v89 = vld [vmem:[#allocation7 + $0x60] sm:$0xff]
    %v90 = vld [vmem:[#allocation7 + $0x68] sm:$0xff]
    %v91 = vld [vmem:[#allocation7 + $0x70] sm:$0xff]
    %v92 = vld [vmem:[#allocation7 + $0x78] sm:$0xff]
    %v93 = vld [vmem:[#allocation5] sm:$0xff]
    %v94 = vld [vmem:[#allocation5 + $0x8] sm:$0xff]
    %v95 = vld [vmem:[#allocation5 + $0x10] sm:$0xff]
    %v96 = vld [vmem:[#allocation5 + $0x18] sm:$0xff]
    %v97 = vld [vmem:[#allocation5 + $0x20] sm:$0xff]
    %v98 = vld [vmem:[#allocation5 + $0x28] sm:$0xff]
    %v99 = vld [vmem:[#allocation5 + $0x30] sm:$0xff]
    %v100 = vld [vmem:[#allocation5 + $0x38] sm:$0xff]
    %v101 = vld [vmem:[#allocation5 + $0x40] sm:$0xff]
    %v102 = vld [vmem:[#allocation5 + $0x48] sm:$0xff]
    %v103 = vld [vmem:[#allocation5 + $0x50] sm:$0xff]
    %v104 = vld [vmem:[#allocation5 + $0x58] sm:$0xff]
    %v105 = vld [vmem:[#allocation5 + $0x60] sm:$0xff]
    %v106 = vld [vmem:[#allocation5 + $0x68] sm:$0xff]
    %v107 = vld [vmem:[#allocation5 + $0x70] sm:$0xff]
    %v108 = vld [vmem:[#allocation5 + $0x78] sm:$0xff]
    %v109 = vld [vmem:[#allocation5 + $0x80] sm:$0xff]
    %v110 = vld [vmem:[#allocation5 + $0x88] sm:$0xff]
    %v111 = vld [vmem:[#allocation5 + $0x90] sm:$0xff]
    %v112 = vld [vmem:[#allocation5 + $0x98] sm:$0xff]
    %v113 = vld [vmem:[#allocation5 + $0xa0] sm:$0xff]
    %v114 = vld [vmem:[#allocation5 + $0xa8] sm:$0xff]
    %v115 = vld [vmem:[#allocation5 + $0xb0] sm:$0xff]
    %v116 = vld [vmem:[#allocation5 + $0xb8] sm:$0xff]
    %v117 = vld [vmem:[#allocation5 + $0xc0] sm:$0xff]
    %v118 = vld [vmem:[#allocation5 + $0xc8] sm:$0xff]
    %v119 = vld [vmem:[#allocation5 + $0xd0] sm:$0xff]
    %v120 = vld [vmem:[#allocation5 + $0xd8] sm:$0xff]
    %v121 = vld [vmem:[#allocation5 + $0xe0] sm:$0xff]
    %v122 = vld [vmem:[#allocation5 + $0xe8] sm:$0xff]
    %v123 = vld [vmem:[#allocation5 + $0xf0] sm:$0xff]
    %v124 = vld [vmem:[#allocation5 + $0xf8] sm:$0xff]
    %v125 = vld [vmem:[#allocation8] sm:$0xff]
    %v126 = vld [vmem:[#allocation8 + $0x8] sm:$0xff]
    %v127 = vld [vmem:[#allocation8 + $0x10] sm:$0xff]
    %v128 = vld [vmem:[#allocation8 + $0x18] sm:$0xff]
    %v129 = vld [vmem:[#allocation8 + $0x20] sm:$0xff]
    %v130 = vld [vmem:[#allocation8 + $0x28] sm:$0xff]
    %v131 = vld [vmem:[#allocation8 + $0x30] sm:$0xff]
    %v132 = vld [vmem:[#allocation8 + $0x38] sm:$0xff]
    %v133 = vld [vmem:[#allocation8 + $0x40] sm:$0xff]
    %v134 = vld [vmem:[#allocation8 + $0x48] sm:$0xff]
    %v135 = vld [vmem:[#allocation8 + $0x50] sm:$0xff]
    %v136 = vld [vmem:[#allocation8 + $0x58] sm:$0xff]
    %v137 = vld [vmem:[#allocation8 + $0x60] sm:$0xff]
    %v138 = vld [vmem:[#allocation8 + $0x68] sm:$0xff]
    %v139 = vld [vmem:[#allocation8 + $0x70] sm:$0xff]
    %v140 = vld [vmem:[#allocation8 + $0x78] sm:$0xff]
    %v141 = vld [vmem:[#allocation8 + $0x80] sm:$0xff]
    %v142 = vld [vmem:[#allocation8 + $0x88] sm:$0xff]
    %v143 = vld [vmem:[#allocation8 + $0x90] sm:$0xff]
    %v144 = vld [vmem:[#allocation8 + $0x98] sm:$0xff]
    %v145 = vld [vmem:[#allocation8 + $0xa0] sm:$0xff]
    %v146 = vld [vmem:[#allocation8 + $0xa8] sm:$0xff]
    %v147 = vld [vmem:[#allocation8 + $0xb0] sm:$0xff]
    %v148 = vld [vmem:[#allocation8 + $0xb8] sm:$0xff]
    %v149 = vld [vmem:[#allocation8 + $0xc0] sm:$0xff]
    %v150 = vld [vmem:[#allocation8 + $0xc8] sm:$0xff]
    %v151 = vld [vmem:[#allocation8 + $0xd0] sm:$0xff]
    %v152 = vld [vmem:[#allocation8 + $0xd8] sm:$0xff]
    %v153 = vld [vmem:[#allocation8 + $0xe0] sm:$0xff]
    %v154 = vld [vmem:[#allocation8 + $0xe8] sm:$0xff]
    %v155 = vld [vmem:[#allocation8 + $0xf0] sm:$0xff]
    %v156 = vld [vmem:[#allocation8 + $0xf8] sm:$0xff]
    %v157 = vld [vmem:[#allocation8 + $0x100] sm:$0xff]
    %v158 = vld [vmem:[#allocation8 + $0x108] sm:$0xff]
    %v159 = vld [vmem:[#allocation8 + $0x110] sm:$0xff]
    %v160 = vld [vmem:[#allocation8 + $0x118] sm:$0xff]
    %v161 = vld [vmem:[#allocation8 + $0x120] sm:$0xff]
    %v162 = vld [vmem:[#allocation8 + $0x128] sm:$0xff]
    %v163 = vld [vmem:[#allocation8 + $0x130] sm:$0xff]
    %v164 = vld [vmem:[#allocation8 + $0x138] sm:$0xff]
    %v165 = vld [vmem:[#allocation8 + $0x140] sm:$0xff]
    %v166 = vld [vmem:[#allocation8 + $0x148] sm:$0xff]
    %v167 = vld [vmem:[#allocation8 + $0x150] sm:$0xff]
    %v168 = vld [vmem:[#allocation8 + $0x158] sm:$0xff]
    %v169 = vld [vmem:[#allocation8 + $0x160] sm:$0xff]
    %v170 = vld [vmem:[#allocation8 + $0x168] sm:$0xff]
    %v171 = vld [vmem:[#allocation8 + $0x170] sm:$0xff]
    %v172 = vld [vmem:[#allocation8 + $0x178] sm:$0xff]
    %v173 = vld [vmem:[#allocation8 + $0x180] sm:$0xff]
    %v174 = vld [vmem:[#allocation8 + $0x188] sm:$0xff]
    %v175 = vld [vmem:[#allocation8 + $0x190] sm:$0xff]
    %v176 = vld [vmem:[#allocation8 + $0x198] sm:$0xff]
    %v177 = vld [vmem:[#allocation8 + $0x1a0] sm:$0xff]
    %v178 = vld [vmem:[#allocation8 + $0x1a8] sm:$0xff]
    %v179 = vld [vmem:[#allocation8 + $0x1b0] sm:$0xff]
    %v180 = vld [vmem:[#allocation8 + $0x1b8] sm:$0xff]
    %v181 = vld [vmem:[#allocation8 + $0x1c0] sm:$0xff]
    %v182 = vld [vmem:[#allocation8 + $0x1c8] sm:$0xff]
    %v183 = vld [vmem:[#allocation8 + $0x1d0] sm:$0xff]
    %v184 = vld [vmem:[#allocation8 + $0x1d8] sm:$0xff]
    %v185 = vld [vmem:[#allocation8 + $0x1e0] sm:$0xff]
    %v186 = vld [vmem:[#allocation8 + $0x1e8] sm:$0xff]
    %v187 = vld [vmem:[#allocation8 + $0x1f0] sm:$0xff]
    %v188 = vld [vmem:[#allocation8 + $0x1f8] sm:$0xff]
    %v189 = vld [vmem:[#allocation8 + $0x200] sm:$0xff]
    %v190 = vld [vmem:[#allocation8 + $0x208] sm:$0xff]
    %v191 = vld [vmem:[#allocation8 + $0x210] sm:$0xff]
    %v192 = vld [vmem:[#allocation8 + $0x218] sm:$0xff]
    %v193 = vld [vmem:[#allocation8 + $0x220] sm:$0xff]
    %v194 = vld [vmem:[#allocation8 + $0x228] sm:$0xff]
    %v195 = vld [vmem:[#allocation8 + $0x230] sm:$0xff]
    %v196 = vld [vmem:[#allocation8 + $0x238] sm:$0xff]
    %v197 = vld [vmem:[#allocation8 + $0x240] sm:$0xff]
    %v198 = vld [vmem:[#allocation8 + $0x248] sm:$0xff]
    %v199 = vld [vmem:[#allocation8 + $0x250] sm:$0xff]
    %v200 = vld [vmem:[#allocation8 + $0x258] sm:$0xff]
    %v201 = vld [vmem:[#allocation8 + $0x260] sm:$0xff]
    %v202 = vld [vmem:[#allocation8 + $0x268] sm:$0xff]
    %v203 = vld [vmem:[#allocation8 + $0x270] sm:$0xff]
    %v204 = vld [vmem:[#allocation8 + $0x278] sm:$0xff]
    %v205 = vld [vmem:[#allocation8 + $0x280] sm:$0xff]
    %v206 = vld [vmem:[#allocation8 + $0x288] sm:$0xff]
    %v207 = vld [vmem:[#allocation8 + $0x290] sm:$0xff]
    %v208 = vld [vmem:[#allocation8 + $0x298] sm:$0xff]
    %v209 = vld [vmem:[#allocation8 + $0x2a0] sm:$0xff]
    %v210 = vld [vmem:[#allocation8 + $0x2a8] sm:$0xff]
    %v211 = vld [vmem:[#allocation8 + $0x2b0] sm:$0xff]
    %v212 = vld [vmem:[#allocation8 + $0x2b8] sm:$0xff]
    %v213 = vld [vmem:[#allocation8 + $0x2c0] sm:$0xff]
    %v214 = vld [vmem:[#allocation8 + $0x2c8] sm:$0xff]
    %v215 = vld [vmem:[#allocation8 + $0x2d0] sm:$0xff]
    %v216 = vld [vmem:[#allocation8 + $0x2d8] sm:$0xff]
    %v217 = vld [vmem:[#allocation8 + $0x2e0] sm:$0xff]
    %v218 = vld [vmem:[#allocation8 + $0x2e8] sm:$0xff]
    %v219 = vld [vmem:[#allocation8 + $0x2f0] sm:$0xff]
    %v220 = vld [vmem:[#allocation8 + $0x2f8] sm:$0xff]
    %v221 = vld [vmem:[#allocation8 + $0x300] sm:$0xff]
    %v222 = vld [vmem:[#allocation8 + $0x308] sm:$0xff]
    %v223 = vld [vmem:[#allocation8 + $0x310] sm:$0xff]
    %v224 = vld [vmem:[#allocation8 + $0x318] sm:$0xff]
    %v225 = vld [vmem:[#allocation8 + $0x320] sm:$0xff]
    %v226 = vld [vmem:[#allocation8 + $0x328] sm:$0xff]
    %v227 = vld [vmem:[#allocation8 + $0x330] sm:$0xff]
    %v228 = vld [vmem:[#allocation8 + $0x338] sm:$0xff]
    %v229 = vld [vmem:[#allocation8 + $0x340] sm:$0xff]
    %v230 = vld [vmem:[#allocation8 + $0x348] sm:$0xff]
    %v231 = vld [vmem:[#allocation8 + $0x350] sm:$0xff]
    %v232 = vld [vmem:[#allocation8 + $0x358] sm:$0xff]
    %v233 = vld [vmem:[#allocation8 + $0x360] sm:$0xff]
    %v234 = vld [vmem:[#allocation8 + $0x368] sm:$0xff]
    %v235 = vld [vmem:[#allocation8 + $0x370] sm:$0xff]
    %v236 = vld [vmem:[#allocation8 + $0x378] sm:$0xff]
    %v237 = vld [vmem:[#allocation8 + $0x380] sm:$0xff]
    %v238 = vld [vmem:[#allocation8 + $0x388] sm:$0xff]
    %v239 = vld [vmem:[#allocation8 + $0x390] sm:$0xff]
    %v240 = vld [vmem:[#allocation8 + $0x398] sm:$0xff]
    %v241 = vld [vmem:[#allocation8 + $0x3a0] sm:$0xff]
    %v242 = vld [vmem:[#allocation8 + $0x3a8] sm:$0xff]
    %v243 = vld [vmem:[#allocation8 + $0x3b0] sm:$0xff]
    %v244 = vld [vmem:[#allocation8 + $0x3b8] sm:$0xff]
    %v245 = vld [vmem:[#allocation8 + $0x3c0] sm:$0xff]
    %v246 = vld [vmem:[#allocation8 + $0x3c8] sm:$0xff]
    %v247 = vld [vmem:[#allocation8 + $0x3d0] sm:$0xff]
    %v248 = vld [vmem:[#allocation8 + $0x3d8] sm:$0xff]
    %v249 = vld [vmem:[#allocation8 + $0x3e0] sm:$0xff]
    %v250 = vld [vmem:[#allocation8 + $0x3e8] sm:$0xff]
    %v251 = vld [vmem:[#allocation8 + $0x3f0] sm:$0xff]
    %v252 = vld [vmem:[#allocation8 + $0x3f8] sm:$0xff]
    %253 = vmatprep.subr.mxu0 0.0
    %254 = vmatpush1.msra.mxu0 %v125
    %255 = vmatprep.subr.mxu0 0.0
    %256 = vmatpush1.msra.mxu0 %v126
    %257 = vmatprep.subr.mxu0 0.0
    %258 = vmatpush1.msra.mxu0 %v127
    %259 = vmatprep.subr.mxu0 0.0
    %260 = vmatpush1.msra.mxu0 %v128
    %261 = vmatprep.subr.mxu0 0.0
    %262 = vmatpush1.msra.mxu0 %v129
    %263 = vmatprep.subr.mxu0 0.0
    %264 = vmatpush1.msra.mxu0 %v130
    %265 = vmatprep.subr.mxu0 0.0
    %266 = vmatpush1.msra.mxu0 %v131
    %267 = vmatprep.subr.mxu0 0.0
    %268 = vmatpush1.msra.mxu0 %v132
    %269 = vmatprep.subr.mxu0 0.0
    %270 = vmatpush1.msra.mxu0 %v133
    %271 = vmatprep.subr.mxu0 0.0
    %272 = vmatpush1.msra.mxu0 %v134
    %273 = vmatprep.subr.mxu0 0.0
    %274 = vmatpush1.msra.mxu0 %v135
    %275 = vmatprep.subr.mxu0 0.0
    %276 = vmatpush1.msra.mxu0 %v136
    %277 = vmatprep.subr.mxu0 0.0
    %278 = vmatpush1.msra.mxu0 %v137
    %279 = vmatprep.subr.mxu0 0.0
    %280 = vmatpush1.msra.mxu0 %v138
    %281 = vmatprep.subr.mxu0 0.0
    %282 = vmatpush1.msra.mxu0 %v139
    %283 = vmatprep.subr.mxu0 0.0
    %284 = vmatpush1.msra.mxu0 %v140
    %285 = vmatprep.subr.mxu0 0.0
    %286 = vmatpush1.msra.mxu0 %v141
    %287 = vmatprep.subr.mxu0 0.0
    %288 = vmatpush1.msra.mxu0 %v142
    %289 = vmatprep.subr.mxu0 0.0
    %290 = vmatpush1.msra.mxu0 %v143
    %291 = vmatprep.subr.mxu0 0.0
    %292 = vmatpush1.msra.mxu0 %v144
    %293 = vmatprep.subr.mxu0 0.0
    %294 = vmatpush1.msra.mxu0 %v145
    %295 = vmatprep.subr.mxu0 0.0
    %296 = vmatpush1.msra.mxu0 %v146
    %297 = vmatprep.subr.mxu0 0.0
    %298 = vmatpush1.msra.mxu0 %v147
    %299 = vmatprep.subr.mxu0 0.0
    %300 = vmatpush1.msra.mxu0 %v148
    %301 = vmatprep.subr.mxu0 0.0
    %302 = vmatpush1.msra.mxu0 %v149
    %303 = vmatprep.subr.mxu0 0.0
    %304 = vmatpush1.msra.mxu0 %v150
    %305 = vmatprep.subr.mxu0 0.0
    %306 = vmatpush1.msra.mxu0 %v151
    %307 = vmatprep.subr.mxu0 0.0
    %308 = vmatpush1.msra.mxu0 %v152
    %309 = vmatprep.subr.mxu0 0.0
    %310 = vmatpush1.msra.mxu0 %v153
    %311 = vmatprep.subr.mxu0 0.0
    %312 = vmatpush1.msra.mxu0 %v154
    %313 = vmatprep.subr.mxu0 0.0
    %314 = vmatpush1.msra.mxu0 %v155
    %315 = vmatprep.subr.mxu0 0.0
    %316 = vmatpush1.msra.mxu0 %v156
    %317 = vmatprep.mubr.f32.mxu0 %v94
    %318 = vmatmul.mubr.f32.gmra.mrb[0].mxu0 %v93
    %v319 = vpop.f32.mrb[0].mxu0
    %v320 = vadd.f32 0.0, %v319
    %v321 = vpop.f32.mrb[0].mxu0
    %322 = vmatprep.mubr.f32.mxu0 %v102
    %323 = vmatmul.mubr.f32.gmra.mrb[0].mxu0 %v101
    %v324 = vpop.f32.mrb[0].mxu0
    %v325 = vadd.f32 0.0, %v324
    %v326 = vpop.f32.mrb[0].mxu0
    %327 = vmatprep.mubr.f32.mxu0 %v110
    %328 = vmatmul.mubr.f32.gmra.mrb[0].mxu0 %v109
    %v329 = vpop.f32.mrb[0].mxu0
    %v330 = vadd.f32 0.0, %v329
    %v331 = vpop.f32.mrb[0].mxu0
    %332 = vmatprep.mubr.f32.mxu0 %v118
    %333 = vmatmul.mubr.f32.gmra.mrb[0].mxu0 %v117
    %v334 = vpop.f32.mrb[0].mxu0
    %v335 = vadd.f32 0.0, %v334
    %v336 = vpop.f32.mrb[0].mxu0
    %337 = vdwg.mxu0
    %338 = vmatprep.subr.mxu0 0.0
    %339 = vmatpush1.msra.mxu0 %v157
    %340 = vmatprep.subr.mxu0 0.0
    %341 = vmatpush1.msra.mxu0 %v158
    %342 = vmatprep.subr.mxu0 0.0
    %343 = vmatpush1.msra.mxu0 %v159
    %344 = vmatprep.subr.mxu0 0.0
    %345 = vmatpush1.msra.mxu0 %v160
    %346 = vmatprep.subr.mxu0 0.0
    %347 = vmatpush1.msra.mxu0 %v161
    %348 = vmatprep.subr.mxu0 0.0
    %349 = vmatpush1.msra.mxu0 %v162
    %350 = vmatprep.subr.mxu0 0.0
    %351 = vmatpush1.msra.mxu0 %v163
    %352 = vmatprep.subr.mxu0 0.0
    %353 = vmatpush1.msra.mxu0 %v164
    %354 = vmatprep.subr.mxu0 0.0
    %355 = vmatpush1.msra.mxu0 %v165
    %356 = vmatprep.subr.mxu0 0.0
    %357 = vmatpush1.msra.mxu0 %v166
    %358 = vmatprep.subr.mxu0 0.0
    %359 = vmatpush1.msra.mxu0 %v167
    %360 = vmatprep.subr.mxu0 0.0
    %361 = vmatpush1.msra.mxu0 %v168
    %362 = vmatprep.subr.mxu0 0.0
    %363 = vmatpush1.msra.mxu0 %v169
    %364 = vmatprep.subr.mxu0 0.0
    %365 = vmatpush1.msra.mxu0 %v170
    %366 = vmatprep.subr.mxu0 0.0
    %367 = vmatpush1.msra.mxu0 %v171
    %368 = vmatprep.subr.mxu0 0.0
    %369 = vmatpush1.msra.mxu0 %v172
    %370 = vmatprep.subr.mxu0 0.0
    %371 = vmatpush1.msra.mxu0 %v173
    %372 = vmatprep.subr.mxu0 0.0
    %373 = vmatpush1.msra.mxu0 %v174
    %374 = vmatprep.subr.mxu0 0.0
    %375 = vmatpush1.msra.mxu0 %v175
    %376 = vmatprep.subr.mxu0 0.0
    %377 = vmatpush1.msra.mxu0 %v176
    %378 = vmatprep.subr.mxu0 0.0
    %379 = vmatpush1.msra.mxu0 %v177
    %380 = vmatprep.subr.mxu0 0.0
    %381 = vmatpush1.msra.mxu0 %v178
    %382 = vmatprep.subr.mxu0 0.0
    %383 = vmatpush1.msra.mxu0 %v179
    %384 = vmatprep.subr.mxu0 0.0
    %385 = vmatpush1.msra.mxu0 %v180
    %386 = vmatprep.subr.mxu0 0.0
    %387 = vmatpush1.msra.mxu0 %v181
    %388 = vmatprep.subr.mxu0 0.0
    %389 = vmatpush1.msra.mxu0 %v182
    %390 = vmatprep.subr.mxu0 0.0
    %391 = vmatpush1.msra.mxu0 %v183
    %392 = vmatprep.subr.mxu0 0.0
    %393 = vmatpush1.msra.mxu0 %v184
    %394 = vmatprep.subr.mxu0 0.0
    %395 = vmatpush1.msra.mxu0 %v185
    %396 = vmatprep.subr.mxu0 0.0
    %397 = vmatpush1.msra.mxu0 %v186
    %398 = vmatprep.subr.mxu0 0.0
    %399 = vmatpush1.msra.mxu0 %v187
    %400 = vmatprep.subr.mxu0 0.0
    %401 = vmatpush1.msra.mxu0 %v188
    %402 = vmatprep.mubr.f32.mxu0 %v96
    %403 = vmatmul.mubr.f32.gmra.mrb[0].mxu0 %v95
    %v404 = vpop.f32.mrb[0].mxu0
    %v405 = vadd.f32 %v320, %v404
    %v406 = vpop.f32.mrb[0].mxu0
    %407 = vmatprep.mubr.f32.mxu0 %v104
    %408 = vmatmul.mubr.f32.gmra.mrb[0].mxu0 %v103
    %v409 = vpop.f32.mrb[0].mxu0
    %v410 = vadd.f32 %v325, %v409
    %v411 = vpop.f32.mrb[0].mxu0
    %412 = vmatprep.mubr.f32.mxu0 %v112
    %413 = vmatmul.mubr.f32.gmra.mrb[0].mxu0 %v111
    %v414 = vpop.f32.mrb[0].mxu0
    %v415 = vadd.f32 %v330, %v414
    %v416 = vpop.f32.mrb[0].mxu0
    %417 = vmatprep.mubr.f32.mxu0 %v120
    %418 = vmatmul.mubr.f32.gmra.mrb[0].mxu0 %v119
    %v419 = vpop.f32.mrb[0].mxu0
    %v420 = vadd.f32 %v335, %v419
    %v421 = vpop.f32.mrb[0].mxu0
    %422 = vdwg.mxu0
    %423 = vmatprep.subr.mxu0 0.0
    %424 = vmatpush1.msra.mxu0 %v189
    %425 = vmatprep.subr.mxu0 0.0
    %426 = vmatpush1.msra.mxu0 %v190
    %427 = vmatprep.subr.mxu0 0.0
    %428 = vmatpush1.msra.mxu0 %v191
    %429 = vmatprep.subr.mxu0 0.0
    %430 = vmatpush1.msra.mxu0 %v192
    %431 = vmatprep.subr.mxu0 0.0
    %432 = vmatpush1.msra.mxu0 %v193
    %433 = vmatprep.subr.mxu0 0.0
    %434 = vmatpush1.msra.mxu0 %v194
    %435 = vmatprep.subr.mxu0 0.0
    %436 = vmatpush1.msra.mxu0 %v195
    %437 = vmatprep.subr.mxu0 0.0
    %438 = vmatpush1.msra.mxu0 %v196
    %439 = vmatprep.subr.mxu0 0.0
    %440 = vmatpush1.msra.mxu0 %v197
    %441 = vmatprep.subr.mxu0 0.0
    %442 = vmatpush1.msra.mxu0 %v198
    %443 = vmatprep.subr.mxu0 0.0
    %444 = vmatpush1.msra.mxu0 %v199
    %445 = vmatprep.subr.mxu0 0.0
    %446 = vmatpush1.msra.mxu0 %v200
    %447 = vmatprep.subr.mxu0 0.0
    %448 = vmatpush1.msra.mxu0 %v201
    %449 = vmatprep.subr.mxu0 0.0
    %450 = vmatpush1.msra.mxu0 %v202
    %451 = vmatprep.subr.mxu0 0.0
    %452 = vmatpush1.msra.mxu0 %v203
    %453 = vmatprep.subr.mxu0 0.0
    %454 = vmatpush1.msra.mxu0 %v204
    %455 = vmatprep.subr.mxu0 0.0
    %456 = vmatpush1.msra.mxu0 %v205
    %457 = vmatprep.subr.mxu0 0.0
    %458 = vmatpush1.msra.mxu0 %v206
    %459 = vmatprep.subr.mxu0 0.0
    %460 = vmatpush1.msra.mxu0 %v207
    %461 = vmatprep.subr.mxu0 0.0
    %462 = vmatpush1.msra.mxu0 %v208
    %463 = vmatprep.subr.mxu0 0.0
    %464 = vmatpush1.msra.mxu0 %v209
    %465 = vmatprep.subr.mxu0 0.0
    %466 = vmatpush1.msra.mxu0 %v210
    %467 = vmatprep.subr.mxu0 0.0
    %468 = vmatpush1.msra.mxu0 %v211
    %469 = vmatprep.subr.mxu0 0.0
    %470 = vmatpush1.msra.mxu0 %v212
    %471 = vmatprep.subr.mxu0 0.0
    %472 = vmatpush1.msra.mxu0 %v213
    %473 = vmatprep.subr.mxu0 0.0
    %474 = vmatpush1.msra.mxu0 %v214
    %475 = vmatprep.subr.mxu0 0.0
    %476 = vmatpush1.msra.mxu0 %v215
    %477 = vmatprep.subr.mxu0 0.0
    %478 = vmatpush1.msra.mxu0 %v216
    %479 = vmatprep.subr.mxu0 0.0
    %480 = vmatpush1.msra.mxu0 %v217
    %481 = vmatprep.subr.mxu0 0.0
    %482 = vmatpush1.msra.mxu0 %v218
    %483 = vmatprep.subr.mxu0 0.0
    %484 = vmatpush1.msra.mxu0 %v219
    %485 = vmatprep.subr.mxu0 0.0
    %486 = vmatpush1.msra.mxu0 %v220
    %487 = vmatprep.mubr.f32.mxu0 %v98
    %488 = vmatmul.mubr.f32.gmra.mrb[0].mxu0 %v97
    %v489 = vpop.f32.mrb[0].mxu0
    %v490 = vadd.f32 %v405, %v489
    %v491 = vpop.f32.mrb[0].mxu0
    %492 = vmatprep.mubr.f32.mxu0 %v106
    %493 = vmatmul.mubr.f32.gmra.mrb[0].mxu0 %v105
    %v494 = vpop.f32.mrb[0].mxu0
    %v495 = vadd.f32 %v410, %v494
    %v496 = vpop.f32.mrb[0].mxu0
    %497 = vmatprep.mubr.f32.mxu0 %v114
    %498 = vmatmul.mubr.f32.gmra.mrb[0].mxu0 %v113
    %v499 = vpop.f32.mrb[0].mxu0
    %v500 = vadd.f32 %v415, %v499
    %v501 = vpop.f32.mrb[0].mxu0
    %502 = vmatprep.mubr.f32.mxu0 %v122
    %503 = vmatmul.mubr.f32.gmra.mrb[0].mxu0 %v121
    %v504 = vpop.f32.mrb[0].mxu0
    %v505 = vadd.f32 %v420, %v504
    %v506 = vpop.f32.mrb[0].mxu0
    %507 = vdwg.mxu0
    %508 = vmatprep.subr.mxu0 0.0
    %509 = vmatpush1.msra.mxu0 %v221
    %510 = vmatprep.subr.mxu0 0.0
    %511 = vmatpush1.msra.mxu0 %v222
    %512 = vmatprep.subr.mxu0 0.0
    %513 = vmatpush1.msra.mxu0 %v223
    %514 = vmatprep.subr.mxu0 0.0
    %515 = vmatpush1.msra.mxu0 %v224
    %516 = vmatprep.subr.mxu0 0.0
    %517 = vmatpush1.msra.mxu0 %v225
    %518 = vmatprep.subr.mxu0 0.0
    %519 = vmatpush1.msra.mxu0 %v226
    %520 = vmatprep.subr.mxu0 0.0
    %521 = vmatpush1.msra.mxu0 %v227
    %522 = vmatprep.subr.mxu0 0.0
    %523 = vmatpush1.msra.mxu0 %v228
    %524 = vmatprep.subr.mxu0 0.0
    %525 = vmatpush1.msra.mxu0 %v229
    %526 = vmatprep.subr.mxu0 0.0
    %527 = vmatpush1.msra.mxu0 %v230
    %528 = vmatprep.subr.mxu0 0.0
    %529 = vmatpush1.msra.mxu0 %v231
    %530 = vmatprep.subr.mxu0 0.0
    %531 = vmatpush1.msra.mxu0 %v232
    %532 = vmatprep.subr.mxu0 0.0
    %533 = vmatpush1.msra.mxu0 %v233
    %534 = vmatprep.subr.mxu0 0.0
    %535 = vmatpush1.msra.mxu0 %v234
    %536 = vmatprep.subr.mxu0 0.0
    %537 = vmatpush1.msra.mxu0 %v235
    %538 = vmatprep.subr.mxu0 0.0
    %539 = vmatpush1.msra.mxu0 %v236
    %540 = vmatprep.subr.mxu0 0.0
    %541 = vmatpush1.msra.mxu0 %v237
    %542 = vmatprep.subr.mxu0 0.0
    %543 = vmatpush1.msra.mxu0 %v238
    %544 = vmatprep.subr.mxu0 0.0
    %545 = vmatpush1.msra.mxu0 %v239
    %546 = vmatprep.subr.mxu0 0.0
    %547 = vmatpush1.msra.mxu0 %v240
    %548 = vmatprep.subr.mxu0 0.0
    %549 = vmatpush1.msra.mxu0 %v241
    %550 = vmatprep.subr.mxu0 0.0
    %551 = vmatpush1.msra.mxu0 %v242
    %552 = vmatprep.subr.mxu0 0.0
    %553 = vmatpush1.msra.mxu0 %v243
    %554 = vmatprep.subr.mxu0 0.0
    %555 = vmatpush1.msra.mxu0 %v244
    %556 = vmatprep.subr.mxu0 0.0
    %557 = vmatpush1.msra.mxu0 %v245
    %558 = vmatprep.subr.mxu0 0.0
    %559 = vmatpush1.msra.mxu0 %v246
    %560 = vmatprep.subr.mxu0 0.0
    %561 = vmatpush1.msra.mxu0 %v247
    %562 = vmatprep.subr.mxu0 0.0
    %563 = vmatpush1.msra.mxu0 %v248
    %564 = vmatprep.subr.mxu0 0.0
    %565 = vmatpush1.msra.mxu0 %v249
    %566 = vmatprep.subr.mxu0 0.0
    %567 = vmatpush1.msra.mxu0 %v250
    %568 = vmatprep.subr.mxu0 0.0
    %569 = vmatpush1.msra.mxu0 %v251
    %570 = vmatprep.subr.mxu0 0.0
    %571 = vmatpush1.msra.mxu0 %v252
    %572 = vmatprep.mubr.f32.mxu0 %v100
    %573 = vmatmul.mubr.f32.gmra.mrb[0].mxu0 %v99
    %v574 = vpop.f32.mrb[0].mxu0
    %v575 = vadd.f32 %v490, %v574
    %v576 = vpop.f32.mrb[0].mxu0
    %577 = vmatprep.mubr.f32.mxu0 %v108
    %578 = vmatmul.mubr.f32.gmra.mrb[0].mxu0 %v107
    %v579 = vpop.f32.mrb[0].mxu0
    %v580 = vadd.f32 %v495, %v579
    %v581 = vpop.f32.mrb[0].mxu0
    %582 = vmatprep.mubr.f32.mxu0 %v116
    %583 = vmatmul.mubr.f32.gmra.mrb[0].mxu0 %v115
    %v584 = vpop.f32.mrb[0].mxu0
    %v585 = vadd.f32 %v500, %v584
    %v586 = vpop.f32.mrb[0].mxu0
    %587 = vmatprep.mubr.f32.mxu0 %v124
    %588 = vmatmul.mubr.f32.gmra.mrb[0].mxu0 %v123
    %v589 = vpop.f32.mrb[0].mxu0
    %v590 = vadd.f32 %v505, %v589
    %v591 = vpop.f32.mrb[0].mxu0
    %592 = vdwg.mxu0
    %593 = vmatprep.subr.mxu0 0.0
    %594 = vmatpush1.msra.mxu0 %v77
    %595 = vmatprep.subr.mxu0 0.0
    %596 = vmatpush1.msra.mxu0 %v78
    %597 = vmatprep.subr.mxu0 0.0
    %598 = vmatpush1.msra.mxu0 %v79
    %599 = vmatprep.subr.mxu0 0.0
    %600 = vmatpush1.msra.mxu0 %v80
    %601 = vmatprep.subr.mxu0 0.0
    %602 = vmatpush1.msra.mxu0 %v81
    %603 = vmatprep.subr.mxu0 0.0
    %604 = vmatpush1.msra.mxu0 %v82
    %605 = vmatprep.subr.mxu0 0.0
    %606 = vmatpush1.msra.mxu0 %v83
    %607 = vmatprep.subr.mxu0 0.0
    %608 = vmatpush1.msra.mxu0 %v84
    %609 = vmatprep.subr.mxu0 0.0
    %610 = vmatpush1.msra.mxu0 %v85
    %611 = vmatprep.subr.mxu0 0.0
    %612 = vmatpush1.msra.mxu0 %v86
    %613 = vmatprep.subr.mxu0 0.0
    %614 = vmatpush1.msra.mxu0 %v87
    %615 = vmatprep.subr.mxu0 0.0
    %616 = vmatpush1.msra.mxu0 %v88
    %617 = vmatprep.subr.mxu0 0.0
    %618 = vmatpush1.msra.mxu0 %v89
    %619 = vmatprep.subr.mxu0 0.0
    %620 = vmatpush1.msra.mxu0 %v90
    %621 = vmatprep.subr.mxu0 0.0
    %622 = vmatpush1.msra.mxu0 %v91
    %623 = vmatprep.subr.mxu0 0.0
    %624 = vmatpush1.msra.mxu0 %v92
    %625 = vmatprep.subr.mxu0 0.0
    %626 = vmatpush1.msra.mxu0 0.0
    %627 = vmatprep.subr.mxu0 0.0
    %628 = vmatpush1.msra.mxu0 0.0
    %629 = vmatprep.subr.mxu0 0.0
    %630 = vmatpush1.msra.mxu0 0.0
    %631 = vmatprep.subr.mxu0 0.0
    %632 = vmatpush1.msra.mxu0 0.0
    %633 = vmatprep.subr.mxu0 0.0
    %634 = vmatpush1.msra.mxu0 0.0
    %635 = vmatprep.subr.mxu0 0.0
    %636 = vmatpush1.msra.mxu0 0.0
    %637 = vmatprep.subr.mxu0 0.0
    %638 = vmatpush1.msra.mxu0 0.0
    %639 = vmatprep.subr.mxu0 0.0
    %640 = vmatpush1.msra.mxu0 0.0
    %641 = vmatprep.subr.mxu0 0.0
    %642 = vmatpush1.msra.mxu0 0.0
    %643 = vmatprep.subr.mxu0 0.0
    %644 = vmatpush1.msra.mxu0 0.0
    %645 = vmatprep.subr.mxu0 0.0
    %646 = vmatpush1.msra.mxu0 0.0
    %647 = vmatprep.subr.mxu0 0.0
    %648 = vmatpush1.msra.mxu0 0.0
    %649 = vmatprep.subr.mxu0 0.0
    %650 = vmatpush1.msra.mxu0 0.0
    %651 = vmatprep.subr.mxu0 0.0
    %652 = vmatpush1.msra.mxu0 0.0
    %653 = vmatprep.subr.mxu0 0.0
    %654 = vmatpush1.msra.mxu0 0.0
    %655 = vmatprep.subr.mxu0 0.0
    %656 = vmatpush1.msra.mxu0 0.0
    %657 = vmatprep.mubr.f32.mxu0 0.0
    %658 = vmatmul.mubr.f32.gmra.mrb[0].mxu0 %v73
    %v659 = vpop.f32.mrb[0].mxu0
    %v660 = vadd.f32 %v575, %v659
    %v661 = vpop.f32.mrb[0].mxu0
    %662 = vmatprep.mubr.f32.mxu0 0.0
    %663 = vmatmul.mubr.f32.gmra.mrb[0].mxu0 %v74
    %v664 = vpop.f32.mrb[0].mxu0
    %v665 = vadd.f32 %v580, %v664
    %v666 = vpop.f32.mrb[0].mxu0
    %667 = vmatprep.mubr.f32.mxu0 0.0
    %668 = vmatmul.mubr.f32.gmra.mrb[0].mxu0 %v75
    %v669 = vpop.f32.mrb[0].mxu0
    %v670 = vadd.f32 %v585, %v669
    %v671 = vpop.f32.mrb[0].mxu0
    %672 = vmatprep.mubr.f32.mxu0 0.0
    %673 = vmatmul.mubr.f32.gmra.mrb[0].mxu0 %v76
    %v674 = vpop.f32.mrb[0].mxu0
    %v675 = vadd.f32 %v590, %v674
    %v676 = vpop.f32.mrb[0].mxu0
    %677 = vdwg.mxu0
    %678 = vst [vmem:[#allocation10] sm:$0xff] %v660
    %679 = vst [vmem:[#allocation10 + $0x8] sm:$0xff] %v665
    %680 = vst [vmem:[#allocation10 + $0x10] sm:$0xff] %v670
    %681 = vst [vmem:[#allocation10 + $0x18] sm:$0xff] %v675
    // Predicated region
    $region34: #{tpu_custom_call.1} parent=1 // pred_check
      _
    $region35: #{tpu_custom_call.1} parent=1 // pred_check_branch
      %683 = sbr.rel (0) target = $region37
    $region36: #{tpu_custom_call.1} parent=1 // pred_region
      %s685 = ssub.s32 512, 512
      %686 = vsyncadd [#allocation4], %s685
      %s687 = sshll.u32 [#allocation10], 4
      %s688 = int_to_ptr.vmem [resolvable:$true] %s687
      %693 = dma.vmem_to_hbm [thread:$0]  %s688, 512, %s4, [#allocation4], 128, 128, 8
    $region37: #{tpu_custom_call.1} parent=1 // pred_fallthru
      _
    // Predicated region
    $region38: #{tpu_custom_call.1} parent=1 // pred_check
      _
    $region39: #{tpu_custom_call.1} parent=1 // pred_check_branch
      %695 = sbr.rel (0) target = $region41
    $region40: #{tpu_custom_call.1} parent=1 // pred_region
      %696 = dma.done [#allocation4], 512
    $region41: #{tpu_custom_call.1} parent=1 // pred_fallthru
      _
    %697 = vsyncpa [#allocation3], 1
    %698 = vsyncpa [#allocation6], 1
    %699 = vsyncpa [#allocation9], 1
    %700 = vsyncpa [#allocation4], 1

</llo_original>
